<compile_context>
chip_gen: v7x
topology: tpu7x:2x2x1
jax: 0.10.0
libtpu: 0.0.40
codegen_flags: <defaults>
</compile_context>

<pallas_src>
import math

import jax
import jax.numpy as jnp
from jax.experimental import pallas as pl
from jax.experimental.pallas import tpu as pltpu


def _advanced_prediction_kernel(a_ref, b_ref, w1_ref, b1_ref, w2_ref, b2_ref,
                                o_ref):
    """Fused head for one batch tile.

    a_ref, b_ref: (bm, H)      f32 inputs
    w1_ref:       (4H, H)      f32  (Linear1 weight, already transposed)
    b1_ref:       (1, H)       f32
    w2_ref:       (H, C)       f32  (Linear2 weight, already transposed)
    b2_ref:       (1, C)       f32
    o_ref:        (bm, C)      f32 logits
    """
    a = a_ref[...]
    b = b_ref[...]

    # torch.cat([a, b, a - b, a * b], dim=-1), built along lanes in VMEM.
    feats = jnp.concatenate([a, b, a - b, a * b], axis=-1)          # (bm, 4H)

    # Dropout(training=False) is the identity.
    # Linear1 (weight-normed at init == raw init weight) + bias.
    h = jnp.dot(feats, w1_ref[...], preferred_element_type=jnp.float32)
    h = h + b1_ref[...]

    # GeLU exactly as written in the PyTorch module (tanh approximation).
    h = 0.5 * h * (1.0 + jnp.tanh(h * 0.7978845608
                                  * (1.0 + 0.044715 * h * h)))

    # Dropout (identity) -> Linear2.
    out = jnp.dot(h, w2_ref[...], preferred_element_type=jnp.float32)
    out = out + b2_ref[...]
    o_ref[...] = out.astype(o_ref.dtype)


def advanced_prediction(a, b, w1, b1, w2, b2, *, max_block_b=256):
    """a, b: (B, H) f32; w1: (4H, H); b1: (1, H); w2: (H, C); b2: (1, C)."""
    batch, hidden = a.shape
    h4, hout = w1.shape
    assert h4 == 4 * hidden and hout == hidden
    num_classes = w2.shape[1]

    # Pad the batch to a sublane multiple and pick one big batch tile (the
    # whole batch when small) so the launch/pipeline overhead is paid once.
    b_pad = max(8, ((batch + 7) // 8) * 8)
    bm = min(max_block_b, b_pad)
    b_pad = ((b_pad + bm - 1) // bm) * bm
    if b_pad != batch:
        pad = b_pad - batch
        a = jnp.pad(a, ((0, pad), (0, 0)))
        b = jnp.pad(b, ((0, pad), (0, 0)))

    out = pl.pallas_call(
        _advanced_prediction_kernel,
        out_shape=jax.ShapeDtypeStruct((b_pad, num_classes), a.dtype),
        grid=(b_pad // bm,),
        in_specs=[
            pl.BlockSpec((bm, hidden), lambda i: (i, 0)),
            pl.BlockSpec((bm, hidden), lambda i: (i, 0)),
            pl.BlockSpec((h4, hidden), lambda i: (0, 0)),
            pl.BlockSpec((1, hidden), lambda i: (0, 0)),
            pl.BlockSpec((hidden, num_classes), lambda i: (0, 0)),
            pl.BlockSpec((1, num_classes), lambda i: (0, 0)),
        ],
        out_specs=pl.BlockSpec((bm, num_classes), lambda i: (i, 0)),
        compiler_params=pltpu.CompilerParams(
            dimension_semantics=("parallel",)),
    )(a, b, w1, b1, w2, b2)
    return out[:batch]


class AdvancedPrediction:
    """Pallas port of the PyTorch AdvancedPrediction (eval mode)."""

    def __init__(self, key, hidden_size, num_classes, dropout=0.2):
        # TODO(synk): dropout is implemented in eval mode only (identity);
        # training-mode stochastic dropout is not translated.
        self.dropout = dropout
        inp = 4 * hidden_size
        k1, k2 = jax.random.split(key)

        # Linear(4H, H, activations=True): weight init N(0, sqrt(2/in)),
        # bias zero.  nn.utils.weight_norm at init is the identity reparam
        # (g = ||v||), so the effective weight equals the init weight.
        w1_torch = math.sqrt(2.0 / inp) * jax.random.normal(
            k1, (hidden_size, inp), jnp.float32)          # PyTorch (out, in)
        self.w1 = jnp.transpose(w1_torch)                  # (4H, H)
        self.b1 = jnp.zeros((1, hidden_size), jnp.float32)

        # Linear(H, num_classes): weight init N(0, sqrt(1/in)), bias zero.
        w2_torch = math.sqrt(1.0 / hidden_size) * jax.random.normal(
            k2, (num_classes, hidden_size), jnp.float32)   # PyTorch (out, in)
        self.w2 = jnp.transpose(w2_torch)                  # (H, C)
        self.b2 = jnp.zeros((1, num_classes), jnp.float32)

    def __call__(self, a, b):
        return advanced_prediction(a, b, self.w1, self.b1, self.w2, self.b2)

    def reference(self, a, b):
        """Pure-JAX reference of the PyTorch forward (eval mode)."""
        feats = jnp.concatenate([a, b, a - b, a * b], axis=-1)
        h = feats @ self.w1 + self.b1
        h = 0.5 * h * (1.0 + jnp.tanh(h * 0.7978845608
                                      * (1.0 + 0.044715 * h * h)))
        return h @ self.w2 + self.b2


if __name__ == "__main__":
    key = jax.random.PRNGKey(0)

    batch, hidden_size, num_classes = 2, 32, 2
    k_mod, k_a, k_b = jax.random.split(key, 3)

    model = AdvancedPrediction(k_mod, hidden_size, num_classes, dropout=0.2)

    a = jax.random.normal(k_a, (batch, hidden_size), jnp.float32)
    b = jax.random.normal(k_b, (batch, hidden_size), jnp.float32)

    y = model(a, b)
    jax.block_until_ready(y)

    assert y.shape == (batch, num_classes), y.shape
    assert y.dtype == jnp.float32

    y_ref = model.reference(a, b)
    assert jnp.allclose(y, y_ref, atol=1e-5, rtol=1e-5), (
        float(jnp.max(jnp.abs(y - y_ref))))

    print("KERNEL_OK")
</pallas_src>

<mosaic_0001>
module attributes {stable_mosaic.version = 11 : i64} {
  func.func @_advanced_prediction_kernel(%arg0: i32, %arg1: memref<8x32xf32, #tpu.memory_space<vmem>>, %arg2: memref<8x32xf32, #tpu.memory_space<vmem>>, %arg3: memref<128x32xf32, #tpu.memory_space<vmem>>, %arg4: memref<1x32xf32, #tpu.memory_space<vmem>>, %arg5: memref<32x2xf32, #tpu.memory_space<vmem>>, %arg6: memref<1x2xf32, #tpu.memory_space<vmem>>, %arg7: memref<8x2xf32, #tpu.memory_space<vmem>>) attributes {dimension_semantics = [#tpu.dimension_semantics<parallel>], iteration_bounds = array<i64: 1>, scalar_prefetch = 0 : i64, scratch_operands = 0 : i64, tpu.core_type = #tpu.core_type<tc>, window_params = [{transform_indices = @transform_0, window_bounds = array<i64: 8, 32>}, {transform_indices = @transform_1, window_bounds = array<i64: 8, 32>}, {pipeline_mode = #tpu.pipeline_mode<synchronous>, transform_indices = @transform_2, window_bounds = array<i64: 128, 32>}, {pipeline_mode = #tpu.pipeline_mode<synchronous>, transform_indices = @transform_3, window_bounds = array<i64: 1, 32>}, {pipeline_mode = #tpu.pipeline_mode<synchronous>, transform_indices = @transform_4, window_bounds = array<i64: 32, 2>}, {pipeline_mode = #tpu.pipeline_mode<synchronous>, transform_indices = @transform_5, window_bounds = array<i64: 1, 2>}, {transform_indices = @transform_6, window_bounds = array<i64: 8, 2>}]} {
    %c0 = arith.constant 0 : index
    %c0_0 = arith.constant 0 : index
    %0 = vector.load %arg1[%c0, %c0_0] : memref<8x32xf32, #tpu.memory_space<vmem>>, vector<8x32xf32>
    %c0_1 = arith.constant 0 : index
    %c0_2 = arith.constant 0 : index
    %1 = vector.load %arg2[%c0_1, %c0_2] : memref<8x32xf32, #tpu.memory_space<vmem>>, vector<8x32xf32>
    %2 = arith.subf %0, %1 : vector<8x32xf32>
    %3 = arith.mulf %0, %1 : vector<8x32xf32>
    %4 = tpu.concatenate %0, %1, %2, %3 in 1 : vector<8x32xf32>, vector<8x32xf32>, vector<8x32xf32>, vector<8x32xf32> -> vector<8x128xf32>
    %c0_3 = arith.constant 0 : index
    %c0_4 = arith.constant 0 : index
    %5 = vector.load %arg3[%c0_3, %c0_4] : memref<128x32xf32, #tpu.memory_space<vmem>>, vector<128x32xf32>
    %cst = arith.constant dense<0.000000e+00> : vector<8x32xf32>
    %6 = tpu.matmul %4, %5, %cst {dimension_numbers = #tpu.dot_dimension_numbers<[1], [0], [0], [1], [0, 0, 1, 1], [], []>} : vector<8x128xf32>, vector<128x32xf32>, vector<8x32xf32> -> vector<8x32xf32>
    %c0_5 = arith.constant 0 : index
    %c0_6 = arith.constant 0 : index
    %7 = vector.load %arg4[%c0_5, %c0_6] : memref<1x32xf32, #tpu.memory_space<vmem>>, vector<1x32xf32>
    %8 = vector.broadcast %7 : vector<1x32xf32> to vector<8x32xf32>
    %9 = arith.addf %6, %8 : vector<8x32xf32>
    %cst_7 = arith.constant 5.000000e-01 : f32
    %10 = vector.broadcast %cst_7 : f32 to vector<8x32xf32>
    %11 = arith.mulf %10, %9 : vector<8x32xf32>
    %cst_8 = arith.constant 0.797884583 : f32
    %12 = vector.broadcast %cst_8 : f32 to vector<8x32xf32>
    %13 = arith.mulf %9, %12 : vector<8x32xf32>
    %cst_9 = arith.constant 4.471500e-02 : f32
    %14 = vector.broadcast %cst_9 : f32 to vector<8x32xf32>
    %15 = arith.mulf %14, %9 : vector<8x32xf32>
    %16 = arith.mulf %15, %9 : vector<8x32xf32>
    %cst_10 = arith.constant 1.000000e+00 : f32
    %17 = vector.broadcast %cst_10 : f32 to vector<8x32xf32>
    %18 = arith.addf %17, %16 : vector<8x32xf32>
    %19 = arith.mulf %13, %18 : vector<8x32xf32>
    %20 = math.tanh %19 : vector<8x32xf32>
    %cst_11 = arith.constant 1.000000e+00 : f32
    %21 = vector.broadcast %cst_11 : f32 to vector<8x32xf32>
    %22 = arith.addf %21, %20 : vector<8x32xf32>
    %23 = arith.mulf %11, %22 : vector<8x32xf32>
    %c0_12 = arith.constant 0 : index
    %c0_13 = arith.constant 0 : index
    %24 = vector.load %arg5[%c0_12, %c0_13] : memref<32x2xf32, #tpu.memory_space<vmem>>, vector<32x2xf32>
    %cst_14 = arith.constant dense<0.000000e+00> : vector<8x2xf32>
    %25 = tpu.matmul %23, %24, %cst_14 {dimension_numbers = #tpu.dot_dimension_numbers<[1], [0], [0], [1], [0, 0, 1, 1], [], []>} : vector<8x32xf32>, vector<32x2xf32>, vector<8x2xf32> -> vector<8x2xf32>
    %c0_15 = arith.constant 0 : index
    %c0_16 = arith.constant 0 : index
    %26 = vector.load %arg6[%c0_15, %c0_16] : memref<1x2xf32, #tpu.memory_space<vmem>>, vector<1x2xf32>
    %27 = vector.broadcast %26 : vector<1x2xf32> to vector<8x2xf32>
    %28 = arith.addf %25, %27 : vector<8x2xf32>
    %c0_17 = arith.constant 0 : index
    %c0_18 = arith.constant 0 : index
    %29 = vector.load %arg7[%c0_17, %c0_18] : memref<8x2xf32, #tpu.memory_space<vmem>>, vector<8x2xf32>
    tpu.vector_store %arg7[%c0_17, %c0_18], %28 {strides = array<i32>} : memref<8x2xf32, #tpu.memory_space<vmem>>, vector<8x2xf32>,
    return
  }
  func.func @transform_0(%arg0: i32) -> (i32, i32) {
    %c0_i32 = arith.constant 0 : i32
    %c0_i32_0 = arith.constant 0 : i32
    return %arg0, %c0_i32 : i32, i32
  }
  func.func @transform_1(%arg0: i32) -> (i32, i32) {
    %c0_i32 = arith.constant 0 : i32
    %c0_i32_0 = arith.constant 0 : i32
    return %arg0, %c0_i32 : i32, i32
  }
  func.func @transform_2(%arg0: i32) -> (i32, i32) {
    %c0_i32 = arith.constant 0 : i32
    %c0_i32_0 = arith.constant 0 : i32
    %c0_i32_1 = arith.constant 0 : i32
    return %c0_i32, %c0_i32_0 : i32, i32
  }
  func.func @transform_3(%arg0: i32) -> (i32, i32) {
    %c0_i32 = arith.constant 0 : i32
    %c0_i32_0 = arith.constant 0 : i32
    %c0_i32_1 = arith.constant 0 : i32
    return %c0_i32, %c0_i32_0 : i32, i32
  }
  func.func @transform_4(%arg0: i32) -> (i32, i32) {
    %c0_i32 = arith.constant 0 : i32
    %c0_i32_0 = arith.constant 0 : i32
    %c0_i32_1 = arith.constant 0 : i32
    return %c0_i32, %c0_i32_0 : i32, i32
  }
  func.func @transform_5(%arg0: i32) -> (i32, i32) {
    %c0_i32 = arith.constant 0 : i32
    %c0_i32_0 = arith.constant 0 : i32
    %c0_i32_1 = arith.constant 0 : i32
    return %c0_i32, %c0_i32_0 : i32, i32
  }
  func.func @transform_6(%arg0: i32) -> (i32, i32) {
    %c0_i32 = arith.constant 0 : i32
    %c0_i32_0 = arith.constant 0 : i32
    return %arg0, %c0_i32 : i32, i32
  }
}

</mosaic_0001>

<llo_original>
// kernel: tpu_custom_call.1
$region0: #{tpu_custom_call.1}
  #allocation0 [shape = 'u32[]', space=smem, size = 0x4, offset = 0x4, fixed_abs, tag = 'smem constant byte address 0x4 - core index']
  #allocation1 [shape = 'u32[144,128]{1,0:T(1,128)}', space=vmem, size = 0x12000, scoped, tag = 'internal scratch']
  %s0 = inlined_call_operand.vmem [shape: f32[8,32], index: 0, kind: input, shape index: {}]
  %s1 = inlined_call_operand.vmem [shape: f32[8,32], index: 1, kind: input, shape index: {}]
  %s2 = inlined_call_operand.vmem [shape: f32[128,32], index: 2, kind: input, shape index: {}]
  %s3 = inlined_call_operand.vmem [shape: f32[1,32], index: 3, kind: input, shape index: {}]
  %s4 = inlined_call_operand.vmem [shape: f32[32,2], index: 4, kind: input, shape index: {}]
  %s5 = inlined_call_operand.vmem [shape: f32[1,2], index: 5, kind: input, shape index: {}]
  %s6 = inlined_call_operand.vmem [shape: f32[8,2], index: 6, kind: output, shape index: {}]
  %s7 = sld [smem:[#allocation0]]
  $region34: #{tpu_custom_call.1} parent=0
    _
  %s9 = ssub.s32 1, %s7
  %s10 = scalar_select 0, %s9, %s7
  // Predicated region
  $region2: #{tpu_custom_call.1} parent=0 // pred_check
    _
  $region3: #{tpu_custom_call.1} parent=0 // pred_check_branch
    %12 = sbr.rel (0) target = $region5
  $region4: #{tpu_custom_call.1} parent=0 // pred_region
    _
  $region5: #{tpu_custom_call.1} parent=0 // pred_fallthru
    _
  // Predicated region
  $region6: #{tpu_custom_call.1} parent=0 // pred_check
    _
  $region7: #{tpu_custom_call.1} parent=0 // pred_check_branch
    %14 = sbr.rel (0) target = $region9
  $region8: #{tpu_custom_call.1} parent=0 // pred_region
    _
  $region9: #{tpu_custom_call.1} parent=0 // pred_fallthru
    _
  // Predicated region
  $region10: #{tpu_custom_call.1} parent=0 // pred_check
    _
  $region11: #{tpu_custom_call.1} parent=0 // pred_check_branch
    %16 = sbr.rel (0) target = $region13
  $region12: #{tpu_custom_call.1} parent=0 // pred_region
    _
  $region13: #{tpu_custom_call.1} parent=0 // pred_fallthru
    _
  // Predicated region
  $region14: #{tpu_custom_call.1} parent=0 // pred_check
    _
  $region15: #{tpu_custom_call.1} parent=0 // pred_check_branch
    %18 = sbr.rel (0) target = $region17
  $region16: #{tpu_custom_call.1} parent=0 // pred_region
    _
  $region17: #{tpu_custom_call.1} parent=0 // pred_fallthru
    _
  // Predicated region
  $region18: #{tpu_custom_call.1} parent=0 // pred_check
    _
  $region19: #{tpu_custom_call.1} parent=0 // pred_check_branch
    %20 = sbr.rel (0) target = $region21
  $region20: #{tpu_custom_call.1} parent=0 // pred_region
    _
  $region21: #{tpu_custom_call.1} parent=0 // pred_fallthru
    _
  // Predicated region
  $region22: #{tpu_custom_call.1} parent=0 // pred_check
    _
  $region23: #{tpu_custom_call.1} parent=0 // pred_check_branch
    %22 = sbr.rel (0) target = $region25
  $region24: #{tpu_custom_call.1} parent=0 // pred_region
    _
  $region25: #{tpu_custom_call.1} parent=0 // pred_fallthru
    _
  %v23 = vld [vmem:[%s0] sm:$0xff]
  %v24 = vld [vmem:[%s1] sm:$0xff]
  %v25 = vsub.f32 %v23, %v24
  %v26 = vmul.f32 %v23, %v24
  %28 = vrot.lane.b32.xlu0 %v24, 32
  %v29 = vpop.permute.xlu0 %28
  %32 = vrot.lane.b32.xlu0 %v25, 64
  %v33 = vpop.permute.xlu0 %32
  %36 = vrot.lane.b32.xlu0 %v26, 96
  %v37 = vpop.permute.xlu0 %36
  %vm39 = vcmask 261120
  %v40 = vsel %vm39, %v23, %v29
  %vm41 = vcmask 523264
  %v42 = vsel %vm41, %v40, %v33
  %vm43 = vcmask 785408
  %v44 = vsel %vm43, %v42, %v37
  %v45 = vld [vmem:[%s2] sm:$0xff]
  %v46 = vld [vmem:[%s2 + $0x8] sm:$0xff]
  %v47 = vld [vmem:[%s2 + $0x10] sm:$0xff]
  %v48 = vld [vmem:[%s2 + $0x18] sm:$0xff]
  %v49 = vld [vmem:[%s2 + $0x20] sm:$0xff]
  %v50 = vld [vmem:[%s2 + $0x28] sm:$0xff]
  %v51 = vld [vmem:[%s2 + $0x30] sm:$0xff]
  %v52 = vld [vmem:[%s2 + $0x38] sm:$0xff]
  %v53 = vld [vmem:[%s2 + $0x40] sm:$0xff]
  %v54 = vld [vmem:[%s2 + $0x48] sm:$0xff]
  %v55 = vld [vmem:[%s2 + $0x50] sm:$0xff]
  %v56 = vld [vmem:[%s2 + $0x58] sm:$0xff]
  %v57 = vld [vmem:[%s2 + $0x60] sm:$0xff]
  %v58 = vld [vmem:[%s2 + $0x68] sm:$0xff]
  %v59 = vld [vmem:[%s2 + $0x70] sm:$0xff]
  %v60 = vld [vmem:[%s2 + $0x78] sm:$0xff]
  %v61 = vld [vmem:[%s3] sm:$0x1]
  %v63 = vlaneseq
  %v64 = vshrl.u32 %v63, 7
  %v65 = vsub.s32 0, %v64
  %v66 = vrot.slane %v61, %v65
  %68 = vmatprep.subr.mxu0 0.0
  %69 = vmatpush1.msra.mxu0 %v45
  %70 = vmatprep.subr.mxu0 0.0
  %71 = vmatpush1.msra.mxu0 %v46
  %72 = vmatprep.subr.mxu0 0.0
  %73 = vmatpush1.msra.mxu0 %v47
  %74 = vmatprep.subr.mxu0 0.0
  %75 = vmatpush1.msra.mxu0 %v48
  %76 = vmatprep.subr.mxu0 0.0
  %77 = vmatpush1.msra.mxu0 %v49
  %78 = vmatprep.subr.mxu0 0.0
  %79 = vmatpush1.msra.mxu0 %v50
  %80 = vmatprep.subr.mxu0 0.0
  %81 = vmatpush1.msra.mxu0 %v51
  %82 = vmatprep.subr.mxu0 0.0
  %83 = vmatpush1.msra.mxu0 %v52
  %84 = vmatprep.subr.mxu0 0.0
  %85 = vmatpush1.msra.mxu0 %v53
  %86 = vmatprep.subr.mxu0 0.0
  %87 = vmatpush1.msra.mxu0 %v54
  %88 = vmatprep.subr.mxu0 0.0
  %89 = vmatpush1.msra.mxu0 %v55
  %90 = vmatprep.subr.mxu0 0.0
  %91 = vmatpush1.msra.mxu0 %v56
  %92 = vmatprep.subr.mxu0 0.0
  %93 = vmatpush1.msra.mxu0 %v57
  %94 = vmatprep.subr.mxu0 0.0
  %95 = vmatpush1.msra.mxu0 %v58
  %96 = vmatprep.subr.mxu0 0.0
  %97 = vmatpush1.msra.mxu0 %v59
  %98 = vmatprep.subr.mxu0 0.0
  %99 = vmatpush1.msra.mxu0 %v60
  %100 = vmatprep.subr.mxu0 0.0
  %101 = vmatpush1.msra.mxu0 0.0
  %102 = vmatprep.subr.mxu0 0.0
  %103 = vmatpush1.msra.mxu0 0.0
  %104 = vmatprep.subr.mxu0 0.0
  %105 = vmatpush1.msra.mxu0 0.0
  %106 = vmatprep.subr.mxu0 0.0
  %107 = vmatpush1.msra.mxu0 0.0
  %108 = vmatprep.subr.mxu0 0.0
  %109 = vmatpush1.msra.mxu0 0.0
  %110 = vmatprep.subr.mxu0 0.0
  %111 = vmatpush1.msra.mxu0 0.0
  %112 = vmatprep.subr.mxu0 0.0
  %113 = vmatpush1.msra.mxu0 0.0
  %114 = vmatprep.subr.mxu0 0.0
  %115 = vmatpush1.msra.mxu0 0.0
  %116 = vmatprep.subr.mxu0 0.0
  %117 = vmatpush1.msra.mxu0 0.0
  %118 = vmatprep.subr.mxu0 0.0
  %119 = vmatpush1.msra.mxu0 0.0
  %120 = vmatprep.subr.mxu0 0.0
  %121 = vmatpush1.msra.mxu0 0.0
  %122 = vmatprep.subr.mxu0 0.0
  %123 = vmatpush1.msra.mxu0 0.0
  %124 = vmatprep.subr.mxu0 0.0
  %125 = vmatpush1.msra.mxu0 0.0
  %126 = vmatprep.subr.mxu0 0.0
  %127 = vmatpush1.msra.mxu0 0.0
  %128 = vmatprep.subr.mxu0 0.0
  %129 = vmatpush1.msra.mxu0 0.0
  %130 = vmatprep.subr.mxu0 0.0
  %131 = vmatpush1.msra.mxu0 0.0
  %132 = vmatprep.mubr.f32.mxu0 0.0
  %133 = vmatmul.mubr.f32.gmra.mrb[0].mxu0 %v44
  %v134 = vpop.f32.mrb[0].mxu0
  %v135 = vadd.f32 %v66, %v134
  %v136 = vpop.f32.mrb[0].mxu0
  %137 = vdwg.mxu0
  %v138 = vmul.f32 %v135, 0.5
  %v139 = vmul.f32 %v135, 0.7978846
  %v140 = vmul.f32 %v135, 0.044715
  %v141 = vmul.f32 %v140, %v135
  %v142 = vadd.f32 %v141, 1.0
  %v143 = vmul.f32 %v139, %v142
  %v144 = vtanh.pop %v143
  %v145 = vadd.f32 %v144, 1.0
  %v146 = vmul.f32 %v138, %v145
  %v147 = vld [vmem:[%s4] sm:$0xff]
  %v148 = vld [vmem:[%s4 + $0x8] sm:$0xff]
  %v149 = vld [vmem:[%s4 + $0x10] sm:$0xff]
  %v150 = vld [vmem:[%s4 + $0x18] sm:$0xff]
  %v151 = vld [vmem:[%s5] sm:$0x1]
  %v153 = vlaneseq
  %v154 = vshrl.u32 %v153, 7
  %v155 = vsub.s32 0, %v154
  %v156 = vrot.slane %v151, %v155
  %v159 = vsel %vm39, %v146, 0
  %161 = vmatprep.subr.mxu0 0.0
  %162 = vmatpush1.msra.mxu0 %v147
  %163 = vmatprep.subr.mxu0 0.0
  %164 = vmatpush1.msra.mxu0 %v148
  %165 = vmatprep.subr.mxu0 0.0
  %166 = vmatpush1.msra.mxu0 %v149
  %167 = vmatprep.subr.mxu0 0.0
  %168 = vmatpush1.msra.mxu0 %v150
  %169 = vmatprep.subr.mxu0 0.0
  %170 = vmatpush1.msra.mxu0 0.0
  %171 = vmatprep.subr.mxu0 0.0
  %172 = vmatpush1.msra.mxu0 0.0
  %173 = vmatprep.subr.mxu0 0.0
  %174 = vmatpush1.msra.mxu0 0.0
  %175 = vmatprep.subr.mxu0 0.0
  %176 = vmatpush1.msra.mxu0 0.0
  %177 = vmatprep.subr.mxu0 0.0
  %178 = vmatpush1.msra.mxu0 0.0
  %179 = vmatprep.subr.mxu0 0.0
  %180 = vmatpush1.msra.mxu0 0.0
  %181 = vmatprep.subr.mxu0 0.0
  %182 = vmatpush1.msra.mxu0 0.0
  %183 = vmatprep.subr.mxu0 0.0
  %184 = vmatpush1.msra.mxu0 0.0
  %185 = vmatprep.subr.mxu0 0.0
  %186 = vmatpush1.msra.mxu0 0.0
  %187 = vmatprep.subr.mxu0 0.0
  %188 = vmatpush1.msra.mxu0 0.0
  %189 = vmatprep.subr.mxu0 0.0
  %190 = vmatpush1.msra.mxu0 0.0
  %191 = vmatprep.subr.mxu0 0.0
  %192 = vmatpush1.msra.mxu0 0.0
  %193 = vmatprep.subr.mxu0 0.0
  %194 = vmatpush1.msra.mxu0 0.0
  %195 = vmatprep.subr.mxu0 0.0
  %196 = vmatpush1.msra.mxu0 0.0
  %197 = vmatprep.subr.mxu0 0.0
  %198 = vmatpush1.msra.mxu0 0.0
  %199 = vmatprep.subr.mxu0 0.0
  %200 = vmatpush1.msra.mxu0 0.0
  %201 = vmatprep.subr.mxu0 0.0
  %202 = vmatpush1.msra.mxu0 0.0
  %203 = vmatprep.subr.mxu0 0.0
  %204 = vmatpush1.msra.mxu0 0.0
  %205 = vmatprep.subr.mxu0 0.0
  %206 = vmatpush1.msra.mxu0 0.0
  %207 = vmatprep.subr.mxu0 0.0
  %208 = vmatpush1.msra.mxu0 0.0
  %209 = vmatprep.subr.mxu0 0.0
  %210 = vmatpush1.msra.mxu0 0.0
  %211 = vmatprep.subr.mxu0 0.0
  %212 = vmatpush1.msra.mxu0 0.0
  %213 = vmatprep.subr.mxu0 0.0
  %214 = vmatpush1.msra.mxu0 0.0
  %215 = vmatprep.subr.mxu0 0.0
  %216 = vmatpush1.msra.mxu0 0.0
  %217 = vmatprep.subr.mxu0 0.0
  %218 = vmatpush1.msra.mxu0 0.0
  %219 = vmatprep.subr.mxu0 0.0
  %220 = vmatpush1.msra.mxu0 0.0
  %221 = vmatprep.subr.mxu0 0.0
  %222 = vmatpush1.msra.mxu0 0.0
  %223 = vmatprep.subr.mxu0 0.0
  %224 = vmatpush1.msra.mxu0 0.0
  %225 = vmatprep.mubr.f32.mxu0 0.0
  %226 = vmatmul.mubr.f32.gmra.mrb[0].mxu0 %v159
  %v227 = vpop.f32.mrb[0].mxu0
  %v228 = vadd.f32 %v156, %v227
  %v229 = vpop.f32.mrb[0].mxu0
  %230 = vdwg.mxu0
  %vm231 = vcmask 15360
  %232 = vst.msk [vmem:[%s6] sm:$0xff] %vm231, %v228
  // Predicated region
  $region26: #{tpu_custom_call.1} parent=0 // pred_check
    _
  $region27: #{tpu_custom_call.1} parent=0 // pred_check_branch
    %234 = sbr.rel (0) target = $region29
  $region28: #{tpu_custom_call.1} parent=0 // pred_region
    _
  $region29: #{tpu_custom_call.1} parent=0 // pred_fallthru
    _
  // Predicated region
  $region30: #{tpu_custom_call.1} parent=0 // pred_check
    _
  $region31: #{tpu_custom_call.1} parent=0 // pred_check_branch
    %236 = sbr.rel (0) target = $region33
  $region32: #{tpu_custom_call.1} parent=0 // pred_region
    _
  $region33: #{tpu_custom_call.1} parent=0 // pred_fallthru
    _

</llo_original>
